<compile_context>
chip_gen: v6e
topology: v6e:2x2x1
jax: 0.10.0
libtpu: 0.0.40
codegen_flags: <defaults>
</compile_context>

<pallas_src>
import jax
import jax.numpy as jnp
from jax.experimental import pallas as pl
from jax.experimental.pallas import tpu as pltpu


def input_embedder_kernel(x_ref, mask_ref, id_ref, cond_ref, out_ref):
    """One (tile_b, tile_n) tile: write the three H-wide channel groups."""
    x = x_ref[...]        # (tb, tn)
    mask = mask_ref[...]  # (tb, tn)
    ids = id_ref[...]     # (tn, H)
    cond = cond_ref[...]  # (1, H)

    tb, tn = x.shape
    H = ids.shape[-1]

    # value_embedded = x.unsqueeze(-1).repeat(1, 1, H)
    out_ref[:, :, 0:H] = jnp.broadcast_to(x[:, :, None], (tb, tn, H))
    # id_embedded = embedding_net_id(arange(N)) broadcast over the batch
    out_ref[:, :, H:2 * H] = jnp.broadcast_to(ids[None, :, :], (tb, tn, H))
    # condition_embedded = condition_embedding * condition_mask.unsqueeze(-1)
    out_ref[:, :, 2 * H:3 * H] = mask[:, :, None] * cond[None, :, :]


def _choose_tiles(B, N, H, itemsize, target_out_tile_bytes=2 << 20):
    # tile_n: a block dim may equal the full array dim, so use full N when it
    # is modest; otherwise use a multiple of 128 so the (B, N) inputs' lane
    # dimension stays legal (Pallas pads the ragged final tile automatically).
    tile_n = N if N <= 1024 else 512
    # tile_b: aim for ~2 MiB output tiles; double-buffered this stays far
    # below the scoped-VMEM default on every generation (incl. v7x).
    rows = max(1, target_out_tile_bytes // (tile_n * 3 * H * itemsize))
    if rows >= B or B <= 8:
        tile_b = B                                  # full dim -> always legal
    else:
        tile_b = max(8, (min(rows, B) // 8) * 8)    # multiple of 8 (sublane)
    return tile_b, tile_n


def input_embedder(x, condition_mask, id_table, cond_emb):
    B, N = x.shape
    H = id_table.shape[1]
    itemsize = jnp.dtype(x.dtype).itemsize
    tile_b, tile_n = _choose_tiles(B, N, H, itemsize)
    grid = (pl.cdiv(B, tile_b), pl.cdiv(N, tile_n))

    cost = pl.CostEstimate(
        flops=B * N * H,  # the mask * condition-embedding multiply
        transcendentals=0,
        bytes_accessed=itemsize * (B * N * 3 * H + 2 * B * N + N * H + H),
    )

    out = pl.pallas_call(
        input_embedder_kernel,
        out_shape=jax.ShapeDtypeStruct((B, N, 3 * H), x.dtype),
        grid=grid,
        in_specs=[
            pl.BlockSpec((tile_b, tile_n), lambda i, j: (i, j)),
            pl.BlockSpec((tile_b, tile_n), lambda i, j: (i, j)),
            # Constant along the batch grid axis -> stays VMEM-resident.
            pl.BlockSpec((tile_n, H), lambda i, j: (j, 0)),
            pl.BlockSpec((1, H), lambda i, j: (0, 0)),
        ],
        out_specs=pl.BlockSpec((tile_b, tile_n, 3 * H), lambda i, j: (i, j, 0)),
        compiler_params=pltpu.CompilerParams(
            dimension_semantics=("parallel", "parallel"),
        ),
        cost_estimate=cost,
    )(x, condition_mask, id_table, cond_emb)

    # (B, N, 3H) -> (B, N*3H): row-major contiguous, so this reshape is free
    # and matches torch.cat([...], dim=-1).flatten(1) byte-for-byte.
    return out.reshape(B, N * 3 * H)


def input_embedder_ref(x, condition_mask, id_table, cond_emb):
    """Pure-JAX reference mirroring the PyTorch forward."""
    B, N = x.shape
    H = id_table.shape[1]
    value_embedded = jnp.broadcast_to(x[:, :, None], (B, N, H))
    id_embedded = jnp.broadcast_to(id_table[None, :, :], (B, N, H))
    condition_embedded = cond_emb[None, :, :] * condition_mask[:, :, None]
    x_embed = jnp.concatenate(
        [value_embedded, id_embedded, condition_embedded], axis=-1
    )
    return x_embed.reshape(B, N * 3 * H)


if __name__ == "__main__":
    B = 2   # batch
    N = 8   # nodes_size
    H = 32  # hidden_size

    key = jax.random.PRNGKey(0)
    k_x, k_mask, k_id, k_cond = jax.random.split(key, 4)

    # Parameters actually used by forward (node_embed / pos_embed are unused).
    id_table = jax.random.normal(k_id, (N, H), dtype=jnp.float32)
    cond_emb = 0.5 * jax.random.normal(k_cond, (1, H), dtype=jnp.float32)

    # Inputs
    x = jax.random.normal(k_x, (B, N), dtype=jnp.float32)
    condition_mask = (jax.random.uniform(k_mask, (B, N)) > 0.5).astype(jnp.float32)

    out = jax.block_until_ready(input_embedder(x, condition_mask, id_table, cond_emb))
    ref = input_embedder_ref(x, condition_mask, id_table, cond_emb)

    assert out.shape == (B, N * 3 * H), out.shape
    assert jnp.allclose(out, ref, atol=1e-6, rtol=1e-6)
    print("KERNEL_OK")
</pallas_src>

<mosaic_0001>
module attributes {stable_mosaic.version = 11 : i64} {
  func.func @input_embedder_kernel(%arg0: i32, %arg1: i32, %arg2: memref<2x8xf32, #tpu.memory_space<vmem>>, %arg3: memref<2x8xf32, #tpu.memory_space<vmem>>, %arg4: memref<8x32xf32, #tpu.memory_space<vmem>>, %arg5: memref<1x32xf32, #tpu.memory_space<vmem>>, %arg6: memref<2x8x96xf32, #tpu.memory_space<vmem>>) attributes {dimension_semantics = [#tpu.dimension_semantics<parallel>, #tpu.dimension_semantics<parallel>], iteration_bounds = array<i64: 1, 1>, scalar_prefetch = 0 : i64, scratch_operands = 0 : i64, tpu.core_type = #tpu.core_type<tc>, window_params = [{transform_indices = @transform_0, window_bounds = array<i64: 2, 8>}, {transform_indices = @transform_1, window_bounds = array<i64: 2, 8>}, {transform_indices = @transform_2, window_bounds = array<i64: 8, 32>}, {pipeline_mode = #tpu.pipeline_mode<synchronous>, transform_indices = @transform_3, window_bounds = array<i64: 1, 32>}, {transform_indices = @transform_4, window_bounds = array<i64: 2, 8, 96>}]} {
    %c0 = arith.constant 0 : index
    %c0_0 = arith.constant 0 : index
    %0 = vector.load %arg2[%c0, %c0_0] : memref<2x8xf32, #tpu.memory_space<vmem>>, vector<2x8xf32>
    %c0_1 = arith.constant 0 : index
    %c0_2 = arith.constant 0 : index
    %1 = vector.load %arg3[%c0_1, %c0_2] : memref<2x8xf32, #tpu.memory_space<vmem>>, vector<2x8xf32>
    %c0_3 = arith.constant 0 : index
    %c0_4 = arith.constant 0 : index
    %2 = vector.load %arg4[%c0_3, %c0_4] : memref<8x32xf32, #tpu.memory_space<vmem>>, vector<8x32xf32>
    %c0_5 = arith.constant 0 : index
    %c0_6 = arith.constant 0 : index
    %3 = vector.load %arg5[%c0_5, %c0_6] : memref<1x32xf32, #tpu.memory_space<vmem>>, vector<1x32xf32>
    %4 = vector.shape_cast %0 : vector<2x8xf32> to vector<2x8x1xf32>
    %5 = vector.shape_cast %4 : vector<2x8x1xf32> to vector<2x8x1xf32>
    %6 = vector.broadcast %5 : vector<2x8x1xf32> to vector<2x8x32xf32>
    %c0_7 = arith.constant 0 : index
    %c0_8 = arith.constant 0 : index
    %c0_9 = arith.constant 0 : index
    %7 = vector.load %arg6[%c0_7, %c0_8, %c0_9] : memref<2x8x96xf32, #tpu.memory_space<vmem>>, vector<2x8x32xf32>
    tpu.vector_store %arg6[%c0_7, %c0_8, %c0_9], %6 {strides = array<i32>} : memref<2x8x96xf32, #tpu.memory_space<vmem>>, vector<2x8x32xf32>,
    %8 = vector.shape_cast %2 : vector<8x32xf32> to vector<1x8x32xf32>
    %9 = vector.shape_cast %8 : vector<1x8x32xf32> to vector<1x8x32xf32>
    %10 = vector.broadcast %9 : vector<1x8x32xf32> to vector<2x8x32xf32>
    %c0_10 = arith.constant 0 : index
    %c0_11 = arith.constant 0 : index
    %c32 = arith.constant 32 : index
    %11 = vector.load %arg6[%c0_10, %c0_11, %c32] : memref<2x8x96xf32, #tpu.memory_space<vmem>>, vector<2x8x32xf32>
    tpu.vector_store %arg6[%c0_10, %c0_11, %c32], %10 {strides = array<i32>} : memref<2x8x96xf32, #tpu.memory_space<vmem>>, vector<2x8x32xf32>,
    %12 = vector.shape_cast %1 : vector<2x8xf32> to vector<2x8x1xf32>
    %13 = vector.shape_cast %3 : vector<1x32xf32> to vector<1x1x32xf32>
    %14 = vector.broadcast %12 : vector<2x8x1xf32> to vector<2x8x32xf32>
    %15 = vector.broadcast %13 : vector<1x1x32xf32> to vector<2x8x32xf32>
    %16 = arith.mulf %14, %15 : vector<2x8x32xf32>
    %c0_12 = arith.constant 0 : index
    %c0_13 = arith.constant 0 : index
    %c64 = arith.constant 64 : index
    %17 = vector.load %arg6[%c0_12, %c0_13, %c64] : memref<2x8x96xf32, #tpu.memory_space<vmem>>, vector<2x8x32xf32>
    tpu.vector_store %arg6[%c0_12, %c0_13, %c64], %16 {strides = array<i32>} : memref<2x8x96xf32, #tpu.memory_space<vmem>>, vector<2x8x32xf32>,
    return
  }
  func.func @transform_0(%arg0: i32, %arg1: i32) -> (i32, i32) {
    %c0_i32 = arith.constant 0 : i32
    return %arg0, %arg1 : i32, i32
  }
  func.func @transform_1(%arg0: i32, %arg1: i32) -> (i32, i32) {
    %c0_i32 = arith.constant 0 : i32
    return %arg0, %arg1 : i32, i32
  }
  func.func @transform_2(%arg0: i32, %arg1: i32) -> (i32, i32) {
    %c0_i32 = arith.constant 0 : i32
    %c0_i32_0 = arith.constant 0 : i32
    return %arg1, %c0_i32 : i32, i32
  }
  func.func @transform_3(%arg0: i32, %arg1: i32) -> (i32, i32) {
    %c0_i32 = arith.constant 0 : i32
    %c0_i32_0 = arith.constant 0 : i32
    %c0_i32_1 = arith.constant 0 : i32
    return %c0_i32, %c0_i32_0 : i32, i32
  }
  func.func @transform_4(%arg0: i32, %arg1: i32) -> (i32, i32, i32) {
    %c0_i32 = arith.constant 0 : i32
    %c0_i32_0 = arith.constant 0 : i32
    return %arg0, %arg1, %c0_i32 : i32, i32, i32
  }
}

</mosaic_0001>

<llo_original>
// kernel: tpu_custom_call.1
$region0: #{tpu_custom_call.1}
  #allocation0 [shape = 'u32[]', space=smem, size = 0x4, offset = 0x4, fixed_abs, tag = 'smem constant byte address 0x4 - core index']
  #allocation1 [shape = 'u32[144,128]{1,0:T(1,128)}', space=vmem, size = 0x12000, scoped, tag = 'internal scratch']
  %s0 = inlined_call_operand.hbm [shape: f32[2,8], index: 0, kind: input, shape index: {}]
  %s1 = inlined_call_operand.hbm [shape: f32[2,8], index: 1, kind: input, shape index: {}]
  %s2 = inlined_call_operand.hbm [shape: f32[8,32], index: 2, kind: input, shape index: {}]
  %s3 = inlined_call_operand.vmem [shape: f32[1,32], index: 3, kind: input, shape index: {}]
  %s4 = inlined_call_operand.hbm [shape: f32[2,8,96], index: 4, kind: output, shape index: {}]
  %s5 = sld [smem:[#allocation0]]
  $region38: #{tpu_custom_call.1} parent=0
    _
  %s7 = ssub.s32 1, %s5
  %s8 = scalar_select 0, %s7, %s5
  $region1: #{tpu_custom_call.1} parent=0
    #allocation2 [shape = 'u8[1024]{0}', space=vmem, size = 0x400, scoped, tag = 'input window, operand 0, single buffered']
    #allocation3 [shape = 's32[1]{0}', space=sflag, size = 0x4, scoped, tag = 'scoped memory for tpu_custom_call.1']
    #allocation4 [shape = 's32[1]{0}', space=sflag, size = 0x4, scoped, tag = 'scoped memory for tpu_custom_call.1']
    #allocation5 [shape = 'u8[1024]{0}', space=vmem, size = 0x400, scoped, tag = 'input window, operand 1, single buffered']
    #allocation6 [shape = 's32[1]{0}', space=sflag, size = 0x4, scoped, tag = 'scoped memory for tpu_custom_call.1']
    #allocation7 [shape = 'u8[4096]{0}', space=vmem, size = 0x1000, scoped, tag = 'input window, operand 2, single buffered']
    #allocation8 [shape = 'u8[8192]{0}', space=vmem, size = 0x2000, scoped, tag = 'output window, operand 0, single buffered']
    %9 = vsyncpa [#allocation3], 0
    %10 = vsyncpa [#allocation6], 0
    %11 = vsyncpa [#allocation4], 0
    // Predicated region
    $region2: #{tpu_custom_call.1} parent=1 // pred_check
      _
    $region3: #{tpu_custom_call.1} parent=1 // pred_check_branch
      %13 = sbr.rel (0) target = $region5
    $region4: #{tpu_custom_call.1} parent=1 // pred_region
      %s15 = ssub.s32 32, 32
      %16 = vsyncadd [#allocation3], %s15
      %s18 = sshll.u32 [#allocation2], 4
      %s19 = int_to_ptr.vmem [resolvable:$true] %s18
      %21 = dma.hbm_to_vmem [thread:$0]  %s0, 32, %s19, [#allocation3]
    $region5: #{tpu_custom_call.1} parent=1 // pred_fallthru
      _
    // Predicated region
    $region6: #{tpu_custom_call.1} parent=1 // pred_check
      _
    $region7: #{tpu_custom_call.1} parent=1 // pred_check_branch
      %23 = sbr.rel (0) target = $region9
    $region8: #{tpu_custom_call.1} parent=1 // pred_region
      %s25 = ssub.s32 32, 32
      %26 = vsyncadd [#allocation6], %s25
      %s28 = sshll.u32 [#allocation5], 4
      %s29 = int_to_ptr.vmem [resolvable:$true] %s28
      %31 = dma.hbm_to_vmem [thread:$0]  %s1, 32, %s29, [#allocation6]
    $region9: #{tpu_custom_call.1} parent=1 // pred_fallthru
      _
    // Predicated region
    $region10: #{tpu_custom_call.1} parent=1 // pred_check
      _
    $region11: #{tpu_custom_call.1} parent=1 // pred_check_branch
      %33 = sbr.rel (0) target = $region13
    $region12: #{tpu_custom_call.1} parent=1 // pred_region
      %s35 = ssub.s32 128, 128
      %36 = vsyncadd [#allocation6], %s35
      %s38 = sshll.u32 [#allocation7], 4
      %s39 = int_to_ptr.vmem [resolvable:$true] %s38
      %41 = dma.hbm_to_vmem [thread:$0]  %s2, 128, %s39, [#allocation6]
    $region13: #{tpu_custom_call.1} parent=1 // pred_fallthru
      _
    // Predicated region
    $region14: #{tpu_custom_call.1} parent=1 // pred_check
      _
    $region15: #{tpu_custom_call.1} parent=1 // pred_check_branch
      %43 = sbr.rel (0) target = $region17
    $region16: #{tpu_custom_call.1} parent=1 // pred_region
      _
    $region17: #{tpu_custom_call.1} parent=1 // pred_fallthru
      _
    // Predicated region
    $region18: #{tpu_custom_call.1} parent=1 // pred_check
      _
    $region19: #{tpu_custom_call.1} parent=1 // pred_check_branch
      %45 = sbr.rel (0) target = $region21
    $region20: #{tpu_custom_call.1} parent=1 // pred_region
      %46 = dma.done [#allocation3], 32
    $region21: #{tpu_custom_call.1} parent=1 // pred_fallthru
      _
    // Predicated region
    $region22: #{tpu_custom_call.1} parent=1 // pred_check
      _
    $region23: #{tpu_custom_call.1} parent=1 // pred_check_branch
      %48 = sbr.rel (0) target = $region25
    $region24: #{tpu_custom_call.1} parent=1 // pred_region
      %49 = dma.done [#allocation6], 32
    $region25: #{tpu_custom_call.1} parent=1 // pred_fallthru
      _
    // Predicated region
    $region26: #{tpu_custom_call.1} parent=1 // pred_check
      _
    $region27: #{tpu_custom_call.1} parent=1 // pred_check_branch
      %51 = sbr.rel (0) target = $region29
    $region28: #{tpu_custom_call.1} parent=1 // pred_region
      %52 = dma.done [#allocation6], 128
    $region29: #{tpu_custom_call.1} parent=1 // pred_fallthru
      _
    %v53 = vld [vmem:[#allocation2] sm:$0x3]
    %v54 = vld [vmem:[#allocation5] sm:$0x3]
    %v55 = vld [vmem:[#allocation7] sm:$0xff]
    %v56 = vld [vmem:[%s3] sm:$0x1]
    %v57 = vlaneseq
    %v58 = vshrl.u32 %v57, 7
    %v59 = vsub.s32 0, %v58
    %v60 = vrot.slane %v53, %v59
    %62 = vbcast.lane.b32.xlu0 %v60, 256
    %v63 = vpop.permute.xlu0 %62
    %v64 = vlaneseq
    %v65 = vshrl.u32 %v64, 7
    %v66 = vsub.s32 1, %v65
    %v67 = vrot.slane %v53, %v66
    %69 = vbcast.lane.b32.xlu0 %v67, 256
    %v70 = vpop.permute.xlu0 %69
    %vm71 = vcmask 261120
    %72 = vst.msk [vmem:[#allocation8] sm:$0xff] %vm71, %v63
    %73 = vst.msk [vmem:[#allocation8 + $0x8] sm:$0xff] %vm71, %v70
    %75 = vrot.lane.b32.xlu0 %v55, 32
    %v76 = vpop.permute.xlu0 %75
    %vm78 = vcmask 523520
    %79 = vst.msk [vmem:[#allocation8] sm:$0xff] %vm78, %v76
    %80 = vst.msk [vmem:[#allocation8 + $0x8] sm:$0xff] %vm78, %v76
    %v81 = vlaneseq
    %v82 = vshrl.u32 %v81, 7
    %v83 = vsub.s32 0, %v82
    %v84 = vrot.slane %v54, %v83
    %86 = vbcast.lane.b32.xlu0 %v84, 256
    %v87 = vpop.permute.xlu0 %86
    %v88 = vlaneseq
    %v89 = vshrl.u32 %v88, 7
    %v90 = vsub.s32 1, %v89
    %v91 = vrot.slane %v54, %v90
    %93 = vbcast.lane.b32.xlu0 %v91, 256
    %v94 = vpop.permute.xlu0 %93
    %v96 = vlaneseq
    %v97 = vshrl.u32 %v96, 7
    %v98 = vsub.s32 0, %v97
    %v99 = vrot.slane %v56, %v98
    %v101 = vmul.f32 %v87, %v99
    %v102 = vmul.f32 %v94, %v99
    %105 = vrot.lane.b32.xlu0 %v101, 64
    %v106 = vpop.permute.xlu0 %105
    %107 = vrot.lane.b32.xlu0 %v102, 64
    %v108 = vpop.permute.xlu0 %107
    %vm111 = vcmask 785920
    %112 = vst.msk [vmem:[#allocation8] sm:$0xff] %vm111, %v106
    %113 = vst.msk [vmem:[#allocation8 + $0x8] sm:$0xff] %vm111, %v108
    // Predicated region
    $region30: #{tpu_custom_call.1} parent=1 // pred_check
      _
    $region31: #{tpu_custom_call.1} parent=1 // pred_check_branch
      %115 = sbr.rel (0) target = $region33
    $region32: #{tpu_custom_call.1} parent=1 // pred_region
      %s117 = ssub.s32 256, 256
      %118 = vsyncadd [#allocation4], %s117
      %s119 = sshll.u32 [#allocation8], 4
      %s120 = int_to_ptr.vmem [resolvable:$true] %s119
      %125 = dma.vmem_to_hbm [thread:$0]  %s120, 256, %s4, [#allocation4], 128, 128, 8
    $region33: #{tpu_custom_call.1} parent=1 // pred_fallthru
      _
    // Predicated region
    $region34: #{tpu_custom_call.1} parent=1 // pred_check
      _
    $region35: #{tpu_custom_call.1} parent=1 // pred_check_branch
      %127 = sbr.rel (0) target = $region37
    $region36: #{tpu_custom_call.1} parent=1 // pred_region
      %128 = dma.done [#allocation4], 256
    $region37: #{tpu_custom_call.1} parent=1 // pred_fallthru
      _
    %129 = vsyncpa [#allocation3], 1
    %130 = vsyncpa [#allocation6], 1
    %131 = vsyncpa [#allocation4], 1

</llo_original>
